<compile_context>
chip_gen: v5e
topology: v5e:2x2
jax: 0.10.0
libtpu: 0.0.40
codegen_flags: <defaults>
</compile_context>

<pallas_src>
import functools

import jax
import jax.numpy as jnp
from jax.experimental import pallas as pl
from jax.experimental.pallas import tpu as pltpu

BN_EPS = 1e-5


def _round_up(n, m):
    return ((n + m - 1) // m) * m


def _gen_model_kernel(
    x_ref, w1_ref, w2_ref, w3_ref, pack_ref, out_ref,
    *, chunk_b, h1p, h2p, outp, num_numerical_inputs,
):
    x = x_ref[...]                     # (rows, in_r) f32
    rows = x.shape[0]
    num_groups = rows // chunk_b       # static

    g1 = pack_ref[0:1, :h1p]
    be1 = pack_ref[1:2, :h1p]
    g2 = pack_ref[2:3, :h2p]
    be2 = pack_ref[3:4, :h2p]
    b3 = pack_ref[4:5, :outp]

    def mm(a, w_ref):
        w = w_ref[...]
        # Weights may be pre-cast to bf16 (MXU-native); accumulate in f32.
        return jnp.dot(a.astype(w.dtype), w, preferred_element_type=jnp.float32)

    def bn_relu(h, gamma, beta):
        # Training-mode BatchNorm1d per independent chunk of `chunk_b` rows.
        # Two-pass statistics (mean, then centered variance) -> folded
        # scale/shift, then ReLU.  Reshape is layout-free (chunk_b % 8 == 0 or
        # a single group == full tile).
        H = h.shape[1]
        hg = h.reshape(num_groups, chunk_b, H)
        mean = jnp.mean(hg, axis=1, keepdims=True)
        centered = hg - mean
        var = jnp.mean(centered * centered, axis=1, keepdims=True)
        normed = (centered * jax.lax.rsqrt(var + BN_EPS)).reshape(rows, H)
        return jnp.maximum(normed * gamma + beta, 0.0)

    h1 = bn_relu(mm(x, w1_ref), g1, be1)     # fc1 (bias cancelled by BN) -> bn1 -> relu
    h2 = bn_relu(mm(h1, w2_ref), g2, be2)    # fc2 (bias cancelled by BN) -> bn2 -> relu
    z = mm(h2, w3_ref) + b3                  # fc3

    # Column split: first num_numerical_inputs -> ReLU, rest -> sigmoid.
    col = jax.lax.broadcasted_iota(jnp.int32, (1, outp), 1)
    is_num = col < num_numerical_inputs
    out_ref[...] = jnp.where(
        is_num, jnp.maximum(z, 0.0), jax.nn.sigmoid(z)).astype(out_ref.dtype)


def prepare_params(raw_params, *, weight_dtype=jnp.bfloat16):
    """Pad weight lane (output) dims to multiples of 128, round the fc1
    contraction dim only to the 8-sublane multiple, cast weights once to
    `weight_dtype`, and pack the small per-feature vectors
    [g1, be1, g2, be2, b3] into one (8, maxP) f32 array.
    fc1/fc2 biases are intentionally dropped (cancelled by training-mode BN)."""
    (w1, _b1, g1, be1, w2, _b2, g2, be2, w3, b3) = raw_params
    in_size, h1 = w1.shape
    h2 = w2.shape[1]
    out = w3.shape[1]

    in_r = _round_up(in_size, 8)        # sublane-aligned only (no 128 pad of x)
    h1p = _round_up(h1, 128)
    h2p = _round_up(h2, 128)
    outp = _round_up(out, 128)
    maxp = max(h1p, h2p, outp)

    def pad2(a, rows, cols):
        return jnp.pad(a, ((0, rows - a.shape[0]), (0, cols - a.shape[1])))

    w1p = pad2(w1, in_r, h1p).astype(weight_dtype)
    w2p = pad2(w2, h1p, h2p).astype(weight_dtype)
    w3p = pad2(w3, h2p, outp).astype(weight_dtype)

    pack = jnp.zeros((8, maxp), jnp.float32)
    pack = pack.at[0, :h1].set(g1[0])
    pack = pack.at[1, :h1].set(be1[0])
    pack = pack.at[2, :h2].set(g2[0])
    pack = pack.at[3, :h2].set(be2[0])
    pack = pack.at[4, :out].set(b3[0])
    return (w1p, w2p, w3p, pack)


def generative_model_forward(
    x, padded_params, num_numerical_inputs, output_size, *,
    chunk_b=None, groups_per_step=None, out_dtype=jnp.float32,
    slice_output=True, single_buffer_weights=False, vmem_limit_bytes=None,
):
    """Forward pass.

    chunk_b=None -> whole batch is one BN group (exact nn.Module semantics).
    chunk_b=K    -> x is a stack of independent module calls of batch K each
                    (BN per chunk); multiple chunks are fused per grid step.
    single_buffer_weights=True (v7x, large hidden sizes): pl.Buffered(1) on the
    loop-invariant weight BlockSpecs to halve their VMEM footprint.
    """
    w1p, w2p, w3p, pack = padded_params
    B = x.shape[0]
    if chunk_b is None:
        chunk_b = B
    assert B % chunk_b == 0, "batch must be divisible by chunk_b"
    num_chunks = B // chunk_b
    assert chunk_b % 8 == 0 or chunk_b == B, \
        "chunk_b must be a multiple of 8 (f32 sublane) unless it is the whole batch"

    if groups_per_step is None:
        # Target ~256 rows per grid step, keep >= 2 steps when possible so the
        # "parallel" grid axis can use both v7x TensorCores.
        groups_per_step = max(1, min(num_chunks, 256 // max(chunk_b, 1)))
        if num_chunks >= 2:
            groups_per_step = max(1, min(groups_per_step, num_chunks // 2))
        while num_chunks % groups_per_step:
            groups_per_step -= 1
    assert num_chunks % groups_per_step == 0
    rows_per_step = groups_per_step * chunk_b
    num_steps = num_chunks // groups_per_step

    in_r, h1p = w1p.shape
    h2p = w2p.shape[1]
    outp = w3p.shape[1]
    maxp = pack.shape[1]

    xp = x.astype(jnp.float32)
    if x.shape[1] != in_r:          # only an 8-lane round-up; no-op when aligned
        xp = jnp.pad(xp, ((0, 0), (0, in_r - x.shape[1])))

    kernel = functools.partial(
        _gen_model_kernel,
        chunk_b=chunk_b, h1p=h1p, h2p=h2p, outp=outp,
        num_numerical_inputs=num_numerical_inputs,
    )

    w_kwargs = {}
    if single_buffer_weights:
        w_kwargs["pipeline_mode"] = pl.Buffered(1)

    flops = 2 * B * (in_r * h1p + h1p * h2p + h2p * outp)
    transcendentals = B * (outp + h1p + h2p)
    bytes_accessed = (
        xp.size * xp.dtype.itemsize
        + w1p.size * w1p.dtype.itemsize
        + w2p.size * w2p.dtype.itemsize
        + w3p.size * w3p.dtype.itemsize
        + pack.size * pack.dtype.itemsize
        + B * outp * jnp.dtype(out_dtype).itemsize
    )
    cost = pl.CostEstimate(flops=int(flops),
                           transcendentals=int(transcendentals),
                           bytes_accessed=int(bytes_accessed))

    cp_kwargs = dict(dimension_semantics=("parallel",))
    if vmem_limit_bytes is not None:
        cp_kwargs["vmem_limit_bytes"] = int(vmem_limit_bytes)

    out_padded = pl.pallas_call(
        kernel,
        out_shape=jax.ShapeDtypeStruct((B, outp), out_dtype),
        grid=(num_steps,),
        in_specs=[
            pl.BlockSpec((rows_per_step, in_r), lambda i: (i, 0)),
            pl.BlockSpec((in_r, h1p), lambda i: (0, 0), **w_kwargs),
            pl.BlockSpec((h1p, h2p), lambda i: (0, 0), **w_kwargs),
            pl.BlockSpec((h2p, outp), lambda i: (0, 0), **w_kwargs),
            pl.BlockSpec((8, maxp), lambda i: (0, 0)),
        ],
        out_specs=pl.BlockSpec((rows_per_step, outp), lambda i: (i, 0)),
        compiler_params=pltpu.CompilerParams(**cp_kwargs),
        cost_estimate=cost,
    )(xp, w1p, w2p, w3p, pack)

    if slice_output:
        return out_padded[:, :output_size]
    # Lane-padded (B, outp) buffer; columns >= output_size are pad garbage.
    return out_padded


def init_params(key, input_size, hidden_size_1, hidden_size_2, output_size):
    """PyTorch-style init: Linear weights stored (in, out) so y = x @ W + b;
    BatchNorm gamma=1, beta=0."""
    k1, k2, k3, k4, k5, k6 = jax.random.split(key, 6)

    def linear(kw, kb, fan_in, fan_out):
        bound = 1.0 / jnp.sqrt(fan_in)
        w = jax.random.uniform(kw, (fan_in, fan_out), jnp.float32, -bound, bound)
        b = jax.random.uniform(kb, (1, fan_out), jnp.float32, -bound, bound)
        return w, b

    w1, b1 = linear(k1, k2, input_size, hidden_size_1)
    w2, b2 = linear(k3, k4, hidden_size_1, hidden_size_2)
    w3, b3 = linear(k5, k6, hidden_size_2, output_size)

    g1 = jnp.ones((1, hidden_size_1), jnp.float32)
    be1 = jnp.zeros((1, hidden_size_1), jnp.float32)
    g2 = jnp.ones((1, hidden_size_2), jnp.float32)
    be2 = jnp.zeros((1, hidden_size_2), jnp.float32)

    return (w1, b1, g1, be1, w2, b2, g2, be2, w3, b3)


def reference_forward(x, raw_params, num_numerical_inputs):
    """Plain-JAX mirror of the PyTorch forward (training-mode BN, with biases)."""
    (w1, b1, g1, be1, w2, b2, g2, be2, w3, b3) = raw_params

    def bn(h, gamma, beta):
        mean = jnp.mean(h, axis=0, keepdims=True)
        var = jnp.mean((h - mean) ** 2, axis=0, keepdims=True)
        return (h - mean) * jax.lax.rsqrt(var + BN_EPS) * gamma + beta

    h1 = jnp.maximum(bn(x @ w1 + b1, g1, be1), 0.0)
    h2 = jnp.maximum(bn(h1 @ w2 + b2, g2, be2), 0.0)
    z = h2 @ w3 + b3
    out_num = jnp.maximum(z[:, :num_numerical_inputs], 0.0)
    out_cat = jax.nn.sigmoid(z[:, num_numerical_inputs:])
    return jnp.concatenate([out_num, out_cat], axis=1)


if __name__ == "__main__":
    batch = 8
    input_size = 16
    hidden_size_1 = 32
    hidden_size_2 = 32
    output_size = 16
    num_numerical_inputs = 6

    key = jax.random.PRNGKey(0)
    kx, kp = jax.random.split(key)
    x = jax.random.normal(kx, (batch, input_size), jnp.float32)
    raw_params = init_params(kp, input_size, hidden_size_1, hidden_size_2, output_size)

    # 1) Exact-semantics check: f32 weights, BN over the full batch (one call).
    params_f32 = prepare_params(raw_params, weight_dtype=jnp.float32)
    out = generative_model_forward(x, params_f32, num_numerical_inputs, output_size)
    out = jax.block_until_ready(out)
    ref = reference_forward(x, raw_params, num_numerical_inputs)
    assert out.shape == (batch, output_size)
    assert jnp.allclose(out, ref, atol=1e-4, rtol=1e-4), "mismatch vs reference (f32)"

    # 2) Chunk-fusion check (f32, tight): 8 independent module calls, 4 BN
    #    groups fused per grid step -> grid=(2,) (both v7x TCs busy).
    n_calls = 8
    xs = jax.random.normal(jax.random.PRNGKey(1),
                           (n_calls * batch, input_size), jnp.float32)
    ref_many = jnp.concatenate(
        [reference_forward(xs[i * batch:(i + 1) * batch], raw_params, num_numerical_inputs)
         for i in range(n_calls)], axis=0)

    out_many_f32 = generative_model_forward(
        xs, params_f32, num_numerical_inputs, output_size, chunk_b=batch)
    out_many_f32 = jax.block_until_ready(out_many_f32)
    assert jnp.allclose(out_many_f32, ref_many, atol=1e-4, rtol=1e-4), \
        "mismatch (multi-chunk, f32)"

    # 3) Performance path: bf16 weights (MXU-native) + bf16 output store.
    #    Loose tolerance: bf16 quantization only (algorithm proven exact above).
    params_bf16 = prepare_params(raw_params)   # weight_dtype=bfloat16 default
    out_many_bf16 = generative_model_forward(
        xs, params_bf16, num_numerical_inputs, output_size,
        chunk_b=batch, out_dtype=jnp.bfloat16)
    out_many_bf16 = jax.block_until_ready(out_many_bf16)
    assert jnp.allclose(out_many_bf16.astype(jnp.float32), ref_many,
                        atol=1e-1, rtol=1e-1), "mismatch (multi-chunk, bf16)"

    print("KERNEL_OK")
</pallas_src>

<mosaic_0001>
module attributes {stable_mosaic.version = 11 : i64} {
  func.func @_gen_model_kernel(%arg0: i32, %arg1: memref<8x16xf32, #tpu.memory_space<vmem>>, %arg2: memref<16x128xf32, #tpu.memory_space<vmem>>, %arg3: memref<128x128xf32, #tpu.memory_space<vmem>>, %arg4: memref<128x128xf32, #tpu.memory_space<vmem>>, %arg5: memref<8x128xf32, #tpu.memory_space<vmem>>, %arg6: memref<8x128xf32, #tpu.memory_space<vmem>>) attributes {dimension_semantics = [#tpu.dimension_semantics<parallel>], iteration_bounds = array<i64: 1>, scalar_prefetch = 0 : i64, scratch_operands = 0 : i64, tpu.core_type = #tpu.core_type<tc>, window_params = [{transform_indices = @transform_0, window_bounds = array<i64: 8, 16>}, {pipeline_mode = #tpu.pipeline_mode<synchronous>, transform_indices = @transform_1, window_bounds = array<i64: 16, 128>}, {pipeline_mode = #tpu.pipeline_mode<synchronous>, transform_indices = @transform_2, window_bounds = array<i64: 128, 128>}, {pipeline_mode = #tpu.pipeline_mode<synchronous>, transform_indices = @transform_3, window_bounds = array<i64: 128, 128>}, {pipeline_mode = #tpu.pipeline_mode<synchronous>, transform_indices = @transform_4, window_bounds = array<i64: 8, 128>}, {transform_indices = @transform_5, window_bounds = array<i64: 8, 128>}]} {
    %c0 = arith.constant 0 : index
    %c0_0 = arith.constant 0 : index
    %0 = vector.load %arg1[%c0, %c0_0] : memref<8x16xf32, #tpu.memory_space<vmem>>, vector<8x16xf32>
    %c0_1 = arith.constant 0 : index
    %c0_2 = arith.constant 0 : index
    %1 = vector.load %arg5[%c0_1, %c0_2] : memref<8x128xf32, #tpu.memory_space<vmem>>, vector<1x128xf32>
    %c1 = arith.constant 1 : index
    %c0_3 = arith.constant 0 : index
    %2 = vector.load %arg5[%c1, %c0_3] : memref<8x128xf32, #tpu.memory_space<vmem>>, vector<1x128xf32>
    %c2 = arith.constant 2 : index
    %c0_4 = arith.constant 0 : index
    %3 = vector.load %arg5[%c2, %c0_4] : memref<8x128xf32, #tpu.memory_space<vmem>>, vector<1x128xf32>
    %c3 = arith.constant 3 : index
    %c0_5 = arith.constant 0 : index
    %4 = vector.load %arg5[%c3, %c0_5] : memref<8x128xf32, #tpu.memory_space<vmem>>, vector<1x128xf32>
    %c4 = arith.constant 4 : index
    %c0_6 = arith.constant 0 : index
    %5 = vector.load %arg5[%c4, %c0_6] : memref<8x128xf32, #tpu.memory_space<vmem>>, vector<1x128xf32>
    %c0_7 = arith.constant 0 : index
    %c0_8 = arith.constant 0 : index
    %6 = vector.load %arg2[%c0_7, %c0_8] : memref<16x128xf32, #tpu.memory_space<vmem>>, vector<16x128xf32>
    %cst = arith.constant dense<0.000000e+00> : vector<8x128xf32>
    %7 = tpu.matmul %0, %6, %cst {dimension_numbers = #tpu.dot_dimension_numbers<[1], [0], [0], [1], [0, 0, 1, 1], [], []>} : vector<8x16xf32>, vector<16x128xf32>, vector<8x128xf32> -> vector<8x128xf32>
    %8 = vector.shape_cast %7 : vector<8x128xf32> to vector<1x8x128xf32>
    %cst_9 = arith.constant dense<0.000000e+00> : vector<1x128xf32>
    %9 = vector.multi_reduction <add>, %8, %cst_9 [1] : vector<1x8x128xf32> to vector<1x128xf32>
    %10 = vector.shape_cast %9 : vector<1x128xf32> to vector<1x1x128xf32>
    %cst_10 = arith.constant 8.000000e+00 : f32
    %11 = vector.broadcast %cst_10 : f32 to vector<1x1x128xf32>
    %12 = arith.divf %10, %11 : vector<1x1x128xf32>
    %13 = vector.broadcast %12 : vector<1x1x128xf32> to vector<1x8x128xf32>
    %14 = arith.subf %8, %13 : vector<1x8x128xf32>
    %15 = arith.mulf %14, %14 : vector<1x8x128xf32>
    %cst_11 = arith.constant dense<0.000000e+00> : vector<1x128xf32>
    %16 = vector.multi_reduction <add>, %15, %cst_11 [1] : vector<1x8x128xf32> to vector<1x128xf32>
    %17 = vector.shape_cast %16 : vector<1x128xf32> to vector<1x1x128xf32>
    %cst_12 = arith.constant 8.000000e+00 : f32
    %18 = vector.broadcast %cst_12 : f32 to vector<1x1x128xf32>
    %19 = arith.divf %17, %18 : vector<1x1x128xf32>
    %cst_13 = arith.constant 9.99999974E-6 : f32
    %20 = vector.broadcast %cst_13 : f32 to vector<1x1x128xf32>
    %21 = arith.addf %19, %20 : vector<1x1x128xf32>
    %22 = math.rsqrt %21 : vector<1x1x128xf32>
    %23 = vector.broadcast %22 : vector<1x1x128xf32> to vector<1x8x128xf32>
    %24 = arith.mulf %14, %23 : vector<1x8x128xf32>
    %25 = vector.shape_cast %24 : vector<1x8x128xf32> to vector<8x128xf32>
    %26 = vector.broadcast %1 : vector<1x128xf32> to vector<8x128xf32>
    %27 = arith.mulf %25, %26 : vector<8x128xf32>
    %28 = vector.broadcast %2 : vector<1x128xf32> to vector<8x128xf32>
    %29 = arith.addf %27, %28 : vector<8x128xf32>
    %cst_14 = arith.constant 0.000000e+00 : f32
    %30 = vector.broadcast %cst_14 : f32 to vector<8x128xf32>
    %31 = arith.maximumf %29, %30 : vector<8x128xf32>
    %c0_15 = arith.constant 0 : index
    %c0_16 = arith.constant 0 : index
    %32 = vector.load %arg3[%c0_15, %c0_16] : memref<128x128xf32, #tpu.memory_space<vmem>>, vector<128x128xf32>
    %cst_17 = arith.constant dense<0.000000e+00> : vector<8x128xf32>
    %33 = tpu.matmul %31, %32, %cst_17 {dimension_numbers = #tpu.dot_dimension_numbers<[1], [0], [0], [1], [0, 0, 1, 1], [], []>} : vector<8x128xf32>, vector<128x128xf32>, vector<8x128xf32> -> vector<8x128xf32>
    %34 = vector.shape_cast %33 : vector<8x128xf32> to vector<1x8x128xf32>
    %cst_18 = arith.constant dense<0.000000e+00> : vector<1x128xf32>
    %35 = vector.multi_reduction <add>, %34, %cst_18 [1] : vector<1x8x128xf32> to vector<1x128xf32>
    %36 = vector.shape_cast %35 : vector<1x128xf32> to vector<1x1x128xf32>
    %cst_19 = arith.constant 8.000000e+00 : f32
    %37 = vector.broadcast %cst_19 : f32 to vector<1x1x128xf32>
    %38 = arith.divf %36, %37 : vector<1x1x128xf32>
    %39 = vector.broadcast %38 : vector<1x1x128xf32> to vector<1x8x128xf32>
    %40 = arith.subf %34, %39 : vector<1x8x128xf32>
    %41 = arith.mulf %40, %40 : vector<1x8x128xf32>
    %cst_20 = arith.constant dense<0.000000e+00> : vector<1x128xf32>
    %42 = vector.multi_reduction <add>, %41, %cst_20 [1] : vector<1x8x128xf32> to vector<1x128xf32>
    %43 = vector.shape_cast %42 : vector<1x128xf32> to vector<1x1x128xf32>
    %cst_21 = arith.constant 8.000000e+00 : f32
    %44 = vector.broadcast %cst_21 : f32 to vector<1x1x128xf32>
    %45 = arith.divf %43, %44 : vector<1x1x128xf32>
    %cst_22 = arith.constant 9.99999974E-6 : f32
    %46 = vector.broadcast %cst_22 : f32 to vector<1x1x128xf32>
    %47 = arith.addf %45, %46 : vector<1x1x128xf32>
    %48 = math.rsqrt %47 : vector<1x1x128xf32>
    %49 = vector.broadcast %48 : vector<1x1x128xf32> to vector<1x8x128xf32>
    %50 = arith.mulf %40, %49 : vector<1x8x128xf32>
    %51 = vector.shape_cast %50 : vector<1x8x128xf32> to vector<8x128xf32>
    %52 = vector.broadcast %3 : vector<1x128xf32> to vector<8x128xf32>
    %53 = arith.mulf %51, %52 : vector<8x128xf32>
    %54 = vector.broadcast %4 : vector<1x128xf32> to vector<8x128xf32>
    %55 = arith.addf %53, %54 : vector<8x128xf32>
    %cst_23 = arith.constant 0.000000e+00 : f32
    %56 = vector.broadcast %cst_23 : f32 to vector<8x128xf32>
    %57 = arith.maximumf %55, %56 : vector<8x128xf32>
    %c0_24 = arith.constant 0 : index
    %c0_25 = arith.constant 0 : index
    %58 = vector.load %arg4[%c0_24, %c0_25] : memref<128x128xf32, #tpu.memory_space<vmem>>, vector<128x128xf32>
    %cst_26 = arith.constant dense<0.000000e+00> : vector<8x128xf32>
    %59 = tpu.matmul %57, %58, %cst_26 {dimension_numbers = #tpu.dot_dimension_numbers<[1], [0], [0], [1], [0, 0, 1, 1], [], []>} : vector<8x128xf32>, vector<128x128xf32>, vector<8x128xf32> -> vector<8x128xf32>
    %60 = vector.broadcast %5 : vector<1x128xf32> to vector<8x128xf32>
    %61 = arith.addf %59, %60 : vector<8x128xf32>
    %62 = tpu.iota {dimensions = array<i32: 1>} : vector<1x128xi32>
    %c6_i32 = arith.constant 6 : i32
    %63 = vector.broadcast %c6_i32 : i32 to vector<1x128xi32>
    %64 = arith.cmpi slt, %62, %63 : vector<1x128xi32>
    %cst_27 = arith.constant 0.000000e+00 : f32
    %65 = vector.broadcast %cst_27 : f32 to vector<8x128xf32>
    %66 = arith.maximumf %61, %65 : vector<8x128xf32>
    %67 = arith.negf %61 : vector<8x128xf32>
    %68 = math.exp %67 : vector<8x128xf32>
    %cst_28 = arith.constant 1.000000e+00 : f32
    %69 = vector.broadcast %cst_28 : f32 to vector<8x128xf32>
    %70 = arith.addf %69, %68 : vector<8x128xf32>
    %71 = arith.divf %69, %70 : vector<8x128xf32>
    %72 = vector.shape_cast %64 : vector<1x128xi1> to vector<1x128xi1>
    %73 = vector.broadcast %72 : vector<1x128xi1> to vector<8x128xi1>
    %74 = arith.select %73, %66, %71 : vector<8x128xi1>, vector<8x128xf32>
    %c0_29 = arith.constant 0 : index
    %c0_30 = arith.constant 0 : index
    %75 = vector.load %arg6[%c0_29, %c0_30] : memref<8x128xf32, #tpu.memory_space<vmem>>, vector<8x128xf32>
    tpu.vector_store %arg6[%c0_29, %c0_30], %74 {strides = array<i32>} : memref<8x128xf32, #tpu.memory_space<vmem>>, vector<8x128xf32>,
    return
  }
  func.func @transform_0(%arg0: i32) -> (i32, i32) {
    %c0_i32 = arith.constant 0 : i32
    %c0_i32_0 = arith.constant 0 : i32
    return %arg0, %c0_i32 : i32, i32
  }
  func.func @transform_1(%arg0: i32) -> (i32, i32) {
    %c0_i32 = arith.constant 0 : i32
    %c0_i32_0 = arith.constant 0 : i32
    %c0_i32_1 = arith.constant 0 : i32
    return %c0_i32, %c0_i32_0 : i32, i32
  }
  func.func @transform_2(%arg0: i32) -> (i32, i32) {
    %c0_i32 = arith.constant 0 : i32
    %c0_i32_0 = arith.constant 0 : i32
    %c0_i32_1 = arith.constant 0 : i32
    return %c0_i32, %c0_i32_0 : i32, i32
  }
  func.func @transform_3(%arg0: i32) -> (i32, i32) {
    %c0_i32 = arith.constant 0 : i32
    %c0_i32_0 = arith.constant 0 : i32
    %c0_i32_1 = arith.constant 0 : i32
    return %c0_i32, %c0_i32_0 : i32, i32
  }
  func.func @transform_4(%arg0: i32) -> (i32, i32) {
    %c0_i32 = arith.constant 0 : i32
    %c0_i32_0 = arith.constant 0 : i32
    %c0_i32_1 = arith.constant 0 : i32
    return %c0_i32, %c0_i32_0 : i32, i32
  }
  func.func @transform_5(%arg0: i32) -> (i32, i32) {
    %c0_i32 = arith.constant 0 : i32
    %c0_i32_0 = arith.constant 0 : i32
    return %arg0, %c0_i32 : i32, i32
  }
}

</mosaic_0001>

<llo_original>
// kernel: tpu_custom_call.1
$region0: #{tpu_custom_call.1}
  #allocation0 [shape = 'u32[]', space=smem, size = 0x4, offset = 0x4, fixed_abs, tag = 'smem constant byte address 0x4 - core index']
  #allocation1 [shape = 'u32[72,128]{1,0:T(1,128)}', space=vmem, size = 0x9000, scoped, tag = 'internal scratch']
  %s0 = inlined_call_operand.hbm [shape: f32[8,16], index: 0, kind: input, shape index: {}]
  %s1 = inlined_call_operand.hbm [shape: f32[16,128], index: 1, kind: input, shape index: {}]
  %s2 = inlined_call_operand.hbm [shape: f32[128,128], index: 2, kind: input, shape index: {}]
  %s3 = inlined_call_operand.hbm [shape: f32[128,128], index: 3, kind: input, shape index: {}]
  %s4 = inlined_call_operand.hbm [shape: f32[8,128], index: 4, kind: input, shape index: {}]
  %s5 = inlined_call_operand.hbm [shape: f32[8,128], index: 5, kind: output, shape index: {}]
  %s6 = sld [smem:[#allocation0]]
  $region50: #{tpu_custom_call.1} parent=0
    _
  %s8 = ssub.s32 1, %s6
  %s9 = scalar_select 0, %s8, %s6
  $region1: #{tpu_custom_call.1} parent=0
    #allocation2 [shape = 'u8[4096]{0}', space=vmem, size = 0x1000, scoped, tag = 'input window, operand 0, single buffered']
    #allocation3 [shape = 's32[1]{0}', space=sflag, size = 0x4, scoped, tag = 'scoped memory for tpu_custom_call.1']
    #allocation4 [shape = 's32[1]{0}', space=sflag, size = 0x4, scoped, tag = 'scoped memory for tpu_custom_call.1']
    #allocation5 [shape = 'u8[8192]{0}', space=vmem, size = 0x2000, scoped, tag = 'input window, operand 1, single buffered']
    #allocation6 [shape = 's32[1]{0}', space=sflag, size = 0x4, scoped, tag = 'scoped memory for tpu_custom_call.1']
    #allocation7 [shape = 'u8[65536]{0}', space=vmem, size = 0x10000, scoped, tag = 'input window, operand 2, single buffered']
    #allocation8 [shape = 'u8[65536]{0}', space=vmem, size = 0x10000, scoped, tag = 'input window, operand 3, single buffered']
    #allocation9 [shape = 's32[1]{0}', space=sflag, size = 0x4, scoped, tag = 'scoped memory for tpu_custom_call.1']
    #allocation10 [shape = 'u8[4096]{0}', space=vmem, size = 0x1000, scoped, tag = 'input window, operand 4, single buffered']
    #allocation11 [shape = 'u8[4096]{0}', space=vmem, size = 0x1000, scoped, tag = 'output window, operand 0, single buffered']
    %10 = vsyncpa [#allocation3], 0
    %11 = vsyncpa [#allocation6], 0
    %12 = vsyncpa [#allocation9], 0
    %13 = vsyncpa [#allocation4], 0
    // Predicated region
    $region2: #{tpu_custom_call.1} parent=1 // pred_check
      _
    $region3: #{tpu_custom_call.1} parent=1 // pred_check_branch
      %15 = sbr.rel (0) target = $region5
    $region4: #{tpu_custom_call.1} parent=1 // pred_region
      %17 = vsyncadd [#allocation3], 0
      %s19 = sshll.u32 %s0, 4
      %s20 = int_to_ptr.hbm [resolvable:$true] %s19
      %s21 = sshll.u32 [#allocation2], 4
      %s22 = int_to_ptr.vmem [resolvable:$true] %s21
      %24 = dma.hbm_to_vmem [thread:$0]  %s20, 128, %s22, [#allocation3]
    $region5: #{tpu_custom_call.1} parent=1 // pred_fallthru
      _
    // Predicated region
    $region6: #{tpu_custom_call.1} parent=1 // pred_check
      _
    $region7: #{tpu_custom_call.1} parent=1 // pred_check_branch
      %26 = sbr.rel (0) target = $region9
    $region8: #{tpu_custom_call.1} parent=1 // pred_region
      %28 = vsyncadd [#allocation6], 0
      %s29 = sshll.u32 %s1, 4
      %s30 = int_to_ptr.hbm [resolvable:$true] %s29
      %s31 = sshll.u32 [#allocation5], 4
      %s32 = int_to_ptr.vmem [resolvable:$true] %s31
      %37 = dma.hbm_to_vmem [thread:$0]  %s30, 256, %s32, [#allocation6], 128, 128, 8
    $region9: #{tpu_custom_call.1} parent=1 // pred_fallthru
      _
    // Predicated region
    $region10: #{tpu_custom_call.1} parent=1 // pred_check
      _
    $region11: #{tpu_custom_call.1} parent=1 // pred_check_branch
      %39 = sbr.rel (0) target = $region13
    $region12: #{tpu_custom_call.1} parent=1 // pred_region
      %41 = vsyncadd [#allocation6], 0
      %s42 = sshll.u32 %s2, 4
      %s43 = int_to_ptr.hbm [resolvable:$true] %s42
      %s44 = sshll.u32 [#allocation7], 4
      %s45 = int_to_ptr.vmem [resolvable:$true] %s44
      %50 = dma.hbm_to_vmem [thread:$0]  %s43, 2048, %s45, [#allocation6], 128, 128, 8
    $region13: #{tpu_custom_call.1} parent=1 // pred_fallthru
      _
    // Predicated region
    $region14: #{tpu_custom_call.1} parent=1 // pred_check
      _
    $region15: #{tpu_custom_call.1} parent=1 // pred_check_branch
      %52 = sbr.rel (0) target = $region17
    $region16: #{tpu_custom_call.1} parent=1 // pred_region
      %54 = vsyncadd [#allocation9], 0
      %s55 = sshll.u32 %s3, 4
      %s56 = int_to_ptr.hbm [resolvable:$true] %s55
      %s57 = sshll.u32 [#allocation8], 4
      %s58 = int_to_ptr.vmem [resolvable:$true] %s57
      %63 = dma.hbm_to_vmem [thread:$0]  %s56, 2048, %s58, [#allocation9], 128, 128, 8
    $region17: #{tpu_custom_call.1} parent=1 // pred_fallthru
      _
    // Predicated region
    $region18: #{tpu_custom_call.1} parent=1 // pred_check
      _
    $region19: #{tpu_custom_call.1} parent=1 // pred_check_branch
      %65 = sbr.rel (0) target = $region21
    $region20: #{tpu_custom_call.1} parent=1 // pred_region
      %67 = vsyncadd [#allocation9], 0
      %s69 = sshll.u32 %s4, 4
      %s70 = int_to_ptr.hbm [resolvable:$true] %s69
      %s71 = sshll.u32 [#allocation10], 4
      %s72 = int_to_ptr.vmem [resolvable:$true] %s71
      %74 = dma.hbm_to_vmem [thread:$0]  %s70, 128, %s72, [#allocation9]
    $region21: #{tpu_custom_call.1} parent=1 // pred_fallthru
      _
    // Predicated region
    $region22: #{tpu_custom_call.1} parent=1 // pred_check
      _
    $region23: #{tpu_custom_call.1} parent=1 // pred_check_branch
      %76 = sbr.rel (0) target = $region25
    $region24: #{tpu_custom_call.1} parent=1 // pred_region
      %78 = dma.done [#allocation3], 128
    $region25: #{tpu_custom_call.1} parent=1 // pred_fallthru
      _
    // Predicated region
    $region26: #{tpu_custom_call.1} parent=1 // pred_check
      _
    $region27: #{tpu_custom_call.1} parent=1 // pred_check_branch
      %80 = sbr.rel (0) target = $region29
    $region28: #{tpu_custom_call.1} parent=1 // pred_region
      %82 = dma.done [#allocation6], 256
    $region29: #{tpu_custom_call.1} parent=1 // pred_fallthru
      _
    // Predicated region
    $region30: #{tpu_custom_call.1} parent=1 // pred_check
      _
    $region31: #{tpu_custom_call.1} parent=1 // pred_check_branch
      %84 = sbr.rel (0) target = $region33
    $region32: #{tpu_custom_call.1} parent=1 // pred_region
      %86 = dma.done [#allocation6], 2048
    $region33: #{tpu_custom_call.1} parent=1 // pred_fallthru
      _
    // Predicated region
    $region34: #{tpu_custom_call.1} parent=1 // pred_check
      _
    $region35: #{tpu_custom_call.1} parent=1 // pred_check_branch
      %88 = sbr.rel (0) target = $region37
    $region36: #{tpu_custom_call.1} parent=1 // pred_region
      %90 = dma.done [#allocation9], 2048
    $region37: #{tpu_custom_call.1} parent=1 // pred_fallthru
      _
    // Predicated region
    $region38: #{tpu_custom_call.1} parent=1 // pred_check
      _
    $region39: #{tpu_custom_call.1} parent=1 // pred_check_branch
      %92 = sbr.rel (0) target = $region41
    $region40: #{tpu_custom_call.1} parent=1 // pred_region
      %94 = dma.done [#allocation9], 128
    $region41: #{tpu_custom_call.1} parent=1 // pred_fallthru
      _
    %v95 = vld [vmem:[#allocation2] sm:$0xff]
    %v96 = vld [vmem:[#allocation10] sm:$0x1]
    %v97 = vld [vmem:[#allocation10 + $0x1] sm:$0x1]
    %v98 = vld [vmem:[#allocation10 + $0x2] sm:$0x1]
    %v99 = vld [vmem:[#allocation10 + $0x3] sm:$0x1]
    %v100 = vld [vmem:[#allocation10 + $0x4] sm:$0x1]
    %v101 = vld [vmem:[#allocation5] sm:$0xff]
    %v102 = vld [vmem:[#allocation5 + $0x8] sm:$0xff]
    %vm103 = vcmask 130048
    %v105 = vsel %vm103, %v95, 0
    %107 = vmatpush.msra.mxu0 0.0
    %108 = vmatpush.msra.mxu0 0.0
    %109 = vmatpush.msra.mxu0 0.0
    %110 = vmatpush.msra.mxu0 0.0
    %111 = vmatpush.msra.mxu0 0.0
    %112 = vmatpush.msra.mxu0 0.0
    %113 = vmatpush.msra.mxu0 0.0
    %114 = vmatpush.msra.mxu0 0.0
    %115 = vmatpush.msra.mxu0 0.0
    %116 = vmatpush.msra.mxu0 0.0
    %117 = vmatpush.msra.mxu0 0.0
    %118 = vmatpush.msra.mxu0 0.0
    %119 = vmatpush.msra.mxu0 0.0
    %120 = vmatpush.msra.mxu0 0.0
    %121 = vmatpush.msra.mxu0 %v102
    %122 = vmatpush.msra.mxu0 %v101
    %123 = vmatmul.f32.gmra.mxu0 %v105
    %v124 = vpop.f32.mrf.mxu0
    %v125 = vadd.f32 0.0, %v124
    %126 = vdwg.mxu0
    %v127 = vrot.slane %v125, 4
    %v128 = vadd.f32 %v125, %v127
    %v129 = vrot.slane %v128, 2
    %v130 = vadd.f32 %v128, %v129
    %v131 = vrot.slane %v130, 1
    %v132 = vadd.f32 %v130, %v131
    %v133 = vrcp.pop 8.0
    %v134 = vmul.f32 8.0, %v133
    %v135 = vsub.f32 1.0, %v134
    %v136 = vmul.f32 %v133, %v135
    %v137 = vadd.f32 %v133, %v136
    %vm138 = vweird.f32 %v133
    %v139 = vsel %vm138, %v133, %v137
    %v140 = vmul.f32 %v132, %v139
    %v141 = vsub.f32 %v125, %v140
    %v142 = vmul.f32 %v141, %v141
    %v143 = vrot.slane %v142, 4
    %v144 = vadd.f32 %v142, %v143
    %v145 = vrot.slane %v144, 2
    %v146 = vadd.f32 %v144, %v145
    %v147 = vrot.slane %v146, 1
    %v148 = vadd.f32 %v146, %v147
    %v149 = vmul.f32 %v148, %v139
    %v150 = vadd.f32 %v149, 1e-05
    %v151 = vrsqrt.pop %v150
    %v152 = vmul.f32 %v151, %v150
    %v153 = vmul.f32 %v152, %v151
    %v154 = vmul.f32 0.5, %v153
    %v155 = vsub.f32 1.5, %v154
    %v156 = vmul.f32 %v151, %v155
    %vm157 = vweird.f32 %v150
    %vm158 = vweird.f32 %v151
    %vm159 = vmor %vm157, %vm158
    %v160 = vsel %vm159, %v151, %v156
    %v161 = vmul.f32 %v141, %v160
    %v162 = vperm.slane %v96, 0
    %v163 = vmul.f32 %v161, %v162
    %v164 = vperm.slane %v97, 0
    %v165 = vadd.f32 %v163, %v164
    %v166 = vmax.f32 %v165, 0.0
    %v167 = vld [vmem:[#allocation7] sm:$0xff]
    %v168 = vld [vmem:[#allocation7 + $0x8] sm:$0xff]
    %v169 = vld [vmem:[#allocation7 + $0x10] sm:$0xff]
    %v170 = vld [vmem:[#allocation7 + $0x18] sm:$0xff]
    %v171 = vld [vmem:[#allocation7 + $0x20] sm:$0xff]
    %v172 = vld [vmem:[#allocation7 + $0x28] sm:$0xff]
    %v173 = vld [vmem:[#allocation7 + $0x30] sm:$0xff]
    %v174 = vld [vmem:[#allocation7 + $0x38] sm:$0xff]
    %v175 = vld [vmem:[#allocation7 + $0x40] sm:$0xff]
    %v176 = vld [vmem:[#allocation7 + $0x48] sm:$0xff]
    %v177 = vld [vmem:[#allocation7 + $0x50] sm:$0xff]
    %v178 = vld [vmem:[#allocation7 + $0x58] sm:$0xff]
    %v179 = vld [vmem:[#allocation7 + $0x60] sm:$0xff]
    %v180 = vld [vmem:[#allocation7 + $0x68] sm:$0xff]
    %v181 = vld [vmem:[#allocation7 + $0x70] sm:$0xff]
    %v182 = vld [vmem:[#allocation7 + $0x78] sm:$0xff]
    %183 = vmatpush.msra.mxu0 %v182
    %184 = vmatpush.msra.mxu0 %v181
    %185 = vmatpush.msra.mxu0 %v180
    %186 = vmatpush.msra.mxu0 %v179
    %187 = vmatpush.msra.mxu0 %v178
    %188 = vmatpush.msra.mxu0 %v177
    %189 = vmatpush.msra.mxu0 %v176
    %190 = vmatpush.msra.mxu0 %v175
    %191 = vmatpush.msra.mxu0 %v174
    %192 = vmatpush.msra.mxu0 %v173
    %193 = vmatpush.msra.mxu0 %v172
    %194 = vmatpush.msra.mxu0 %v171
    %195 = vmatpush.msra.mxu0 %v170
    %196 = vmatpush.msra.mxu0 %v169
    %197 = vmatpush.msra.mxu0 %v168
    %198 = vmatpush.msra.mxu0 %v167
    %199 = vmatmul.f32.gmra.mxu0 %v166
    %v200 = vpop.f32.mrf.mxu0
    %v201 = vadd.f32 0.0, %v200
    %202 = vdwg.mxu0
    %v203 = vrot.slane %v201, 4
    %v204 = vadd.f32 %v201, %v203
    %v205 = vrot.slane %v204, 2
    %v206 = vadd.f32 %v204, %v205
    %v207 = vrot.slane %v206, 1
    %v208 = vadd.f32 %v206, %v207
    %v209 = vmul.f32 %v208, %v139
    %v210 = vsub.f32 %v201, %v209
    %v211 = vmul.f32 %v210, %v210
    %v212 = vrot.slane %v211, 4
    %v213 = vadd.f32 %v211, %v212
    %v214 = vrot.slane %v213, 2
    %v215 = vadd.f32 %v213, %v214
    %v216 = vrot.slane %v215, 1
    %v217 = vadd.f32 %v215, %v216
    %v218 = vmul.f32 %v217, %v139
    %v219 = vadd.f32 %v218, 1e-05
    %v220 = vrsqrt.pop %v219
    %v221 = vmul.f32 %v220, %v219
    %v222 = vmul.f32 %v221, %v220
    %v223 = vmul.f32 0.5, %v222
    %v224 = vsub.f32 1.5, %v223
    %v225 = vmul.f32 %v220, %v224
    %vm226 = vweird.f32 %v219
    %vm227 = vweird.f32 %v220
    %vm228 = vmor %vm226, %vm227
    %v229 = vsel %vm228, %v220, %v225
    %v230 = vmul.f32 %v210, %v229
    %v231 = vperm.slane %v98, 0
    %v232 = vmul.f32 %v230, %v231
    %v233 = vperm.slane %v99, 0
    %v234 = vadd.f32 %v232, %v233
    %v235 = vmax.f32 %v234, 0.0
    %v236 = vld [vmem:[#allocation8] sm:$0xff]
    %v237 = vld [vmem:[#allocation8 + $0x8] sm:$0xff]
    %v238 = vld [vmem:[#allocation8 + $0x10] sm:$0xff]
    %v239 = vld [vmem:[#allocation8 + $0x18] sm:$0xff]
    %v240 = vld [vmem:[#allocation8 + $0x20] sm:$0xff]
    %v241 = vld [vmem:[#allocation8 + $0x28] sm:$0xff]
    %v242 = vld [vmem:[#allocation8 + $0x30] sm:$0xff]
    %v243 = vld [vmem:[#allocation8 + $0x38] sm:$0xff]
    %v244 = vld [vmem:[#allocation8 + $0x40] sm:$0xff]
    %v245 = vld [vmem:[#allocation8 + $0x48] sm:$0xff]
    %v246 = vld [vmem:[#allocation8 + $0x50] sm:$0xff]
    %v247 = vld [vmem:[#allocation8 + $0x58] sm:$0xff]
    %v248 = vld [vmem:[#allocation8 + $0x60] sm:$0xff]
    %v249 = vld [vmem:[#allocation8 + $0x68] sm:$0xff]
    %v250 = vld [vmem:[#allocation8 + $0x70] sm:$0xff]
    %v251 = vld [vmem:[#allocation8 + $0x78] sm:$0xff]
    %v252 = vperm.slane %v100, 0
    %253 = vmatpush.msra.mxu0 %v251
    %254 = vmatpush.msra.mxu0 %v250
    %255 = vmatpush.msra.mxu0 %v249
    %256 = vmatpush.msra.mxu0 %v248
    %257 = vmatpush.msra.mxu0 %v247
    %258 = vmatpush.msra.mxu0 %v246
    %259 = vmatpush.msra.mxu0 %v245
    %260 = vmatpush.msra.mxu0 %v244
    %261 = vmatpush.msra.mxu0 %v243
    %262 = vmatpush.msra.mxu0 %v242
    %263 = vmatpush.msra.mxu0 %v241
    %264 = vmatpush.msra.mxu0 %v240
    %265 = vmatpush.msra.mxu0 %v239
    %266 = vmatpush.msra.mxu0 %v238
    %267 = vmatpush.msra.mxu0 %v237
    %268 = vmatpush.msra.mxu0 %v236
    %269 = vmatmul.f32.gmra.mxu0 %v235
    %v270 = vpop.f32.mrf.mxu0
    %v271 = vadd.f32 %v252, %v270
    %272 = vdwg.mxu0
    %v273 = vlaneseq
    %v274 = vand.u32 %v273, 127
    %vm275 = vcmp.lt.s32.totalorder %v274, 6
    %v276 = vmax.f32 %v271, 0.0
    %v277 = vxor.u32 %v271, 2147483648
    %v278 = vmul.f32 %v277, 1.442695
    %v279 = vpow.pop %v278
    %v280 = vadd.f32 %v279, 1.0
    %v281 = vrcp.pop %v280
    %v282 = vmul.f32 %v280, %v281
    %v283 = vsub.f32 1.0, %v282
    %v284 = vmul.f32 %v281, %v283
    %v285 = vadd.f32 %v281, %v284
    %vm286 = vweird.f32 %v280
    %vm287 = vweird.f32 %v281
    %vm288 = vmor %vm286, %vm287
    %v289 = vsel %vm288, %v281, %v285
    %v290 = vand.u32 2147483647, %v280
    %vm291 = vcmp.eq.f32.partialorder %v290, 8.507059e+37
    %v292 = vand.u32 %v280, 2147483648
    %v293 = vor.u32 1.1754944e-38, %v292
    %v294 = vsel %vm291, %v293, %v289
    %v295 = vmul.f32 1.0, %v294
    %v296 = vsel %vm275, 1, 0
    %vm297 = vcmp.eq.s32.totalorder %v296, 1
    %v298 = vsel %vm297, %v276, %v295
    %299 = vst [vmem:[#allocation11] sm:$0xff] %v298
    // Predicated region
    $region42: #{tpu_custom_call.1} parent=1 // pred_check
      _
    $region43: #{tpu_custom_call.1} parent=1 // pred_check_branch
      %301 = sbr.rel (0) target = $region45
    $region44: #{tpu_custom_call.1} parent=1 // pred_region
      %303 = vsyncadd [#allocation4], 0
      %s305 = sshll.u32 [#allocation11], 4
      %s306 = int_to_ptr.vmem [resolvable:$true] %s305
      %s307 = sshll.u32 %s5, 4
      %s308 = int_to_ptr.hbm [resolvable:$true] %s307
      %310 = dma.vmem_to_hbm [thread:$0]  %s306, 128, %s308, [#allocation4]
    $region45: #{tpu_custom_call.1} parent=1 // pred_fallthru
      _
    // Predicated region
    $region46: #{tpu_custom_call.1} parent=1 // pred_check
      _
    $region47: #{tpu_custom_call.1} parent=1 // pred_check_branch
      %312 = sbr.rel (0) target = $region49
    $region48: #{tpu_custom_call.1} parent=1 // pred_region
      %314 = dma.done [#allocation4], 128
    $region49: #{tpu_custom_call.1} parent=1 // pred_fallthru
      _
    %315 = vsyncpa [#allocation3], 1
    %316 = vsyncpa [#allocation6], 1
    %317 = vsyncpa [#allocation9], 1
    %318 = vsyncpa [#allocation4], 1

</llo_original>
